<compile_context>
chip_gen: v5e
topology: v5e:2x2
jax: 0.10.0
libtpu: 0.0.40
codegen_flags: <defaults>
</compile_context>

<pallas_src>
import jax
import jax.numpy as jnp
from jax.experimental import pallas as pl
from jax.experimental.pallas import tpu as pltpu


# --------------------------------------------------------------------------- #
# Kernel
# --------------------------------------------------------------------------- #
def _min_lstm_kernel(x_ref, w_ref, hx_ref, hy_ref, cy_ref):
    x = x_ref[...]

    # Three lane-aligned per-gate matmuls on the MXU, f32 accumulation.
    # w_ref block is (3, D, th); indexing the leading axis is a cheap VMEM load.
    gi = jnp.dot(x, w_ref[0], preferred_element_type=jnp.float32)
    gf = jnp.dot(x, w_ref[1], preferred_element_type=jnp.float32)
    gc = jnp.dot(x, w_ref[2], preferred_element_type=jnp.float32)

    si = jax.nn.sigmoid(gi)
    sf = jax.nn.sigmoid(gf)

    # ingate = si / (si + sf): EUP approx reciprocal + one Newton refinement
    # (keeps the result within ~1e-7 relative of exact f32 division).
    denom = si + sf
    r = pl.reciprocal(denom, approx=True)
    r = r * (2.0 - denom * r)
    ingate = si * r

    hx = hx_ref[...].astype(jnp.float32)
    # hy = hx*(1-ingate) + ingate*gc  ==  hx + ingate*(gc - hx)
    hy = hx + ingate * (gc - hx)

    hy_ref[...] = hy.astype(hy_ref.dtype)
    cy_ref[...] = gc.astype(cy_ref.dtype)


# --------------------------------------------------------------------------- #
# Wrapper helpers
# --------------------------------------------------------------------------- #
def prepare_weight(weight, compute_dtype=jnp.bfloat16):
    """One-time (init-time) weight prep.

    weight: (D, 3H) = PyTorch Linear.weight.T  (so gates = x @ weight).
    Returns a gate-split, lane-friendly (3, D, H) array in `compute_dtype`.
    Call once at model init — NOT inside the per-step hot path.
    """
    D, threeH = weight.shape
    assert threeH % 3 == 0
    H = threeH // 3
    w3 = weight.reshape(D, 3, H).transpose(1, 0, 2)  # (3, D, H)
    return jnp.asarray(w3, dtype=compute_dtype)


def _vmem_cap_bytes():
    try:
        kind = jax.devices()[0].device_kind.lower()
    except Exception:
        kind = ""
    if "v5" in kind or "v6" in kind:
        return 100 << 20  # 128 MiB physical: allow big tiles near HBM roofline
    return 48 << 20       # v7x (64 MiB physical) / unknown: stay conservative


def _choose_th(H, D, w_bytes, cap):
    if H % 128 == 0:
        th = 128
        for cand in (512, 256, 128):
            if H % cand == 0:
                th = cand
                break
        # Keep the double-buffered weight stream well under the VMEM cap.
        while th > 128 and (2 * 3 * D * th * w_bytes) > cap // 2:
            th //= 2
        return th
    # TODO(synk): H not a multiple of 128 lowers to masked (vst.msk) partial
    # stores; pad H to a lane multiple at model-definition time for production.
    return H


# --------------------------------------------------------------------------- #
# Public entry point
# --------------------------------------------------------------------------- #
def min_lstm_cell(x, w_prep, hx, *, tb=None, th=None,
                  compute_dtype=jnp.bfloat16):
    """minLSTM cell forward.

    x:      (B, D)
    w_prep: (3, D, H)  prepared once via prepare_weight()
    hx:     (B, H)
    returns (hy, cy), each (B, H), in x.dtype.
    """
    B, D = x.shape
    H = hx.shape[-1]
    assert w_prep.shape == (3, D, H)
    assert hx.shape == (B, H)

    out_dtype = x.dtype
    xc = x.astype(compute_dtype)
    wc = w_prep.astype(compute_dtype)  # no-op if already prepared in bf16

    x_bytes = jnp.dtype(xc.dtype).itemsize
    w_bytes = jnp.dtype(wc.dtype).itemsize
    hx_bytes = jnp.dtype(hx.dtype).itemsize
    out_bytes = jnp.dtype(out_dtype).itemsize

    cap = _vmem_cap_bytes()
    if th is None:
        th = _choose_th(H, D, w_bytes, cap)
    if tb is None:
        tb = B if B <= 256 else 256

    # Grid: hidden tiles outer (slow), batch tiles inner (fast) so the weight
    # block index is constant across the inner loop (no weight re-streaming).
    grid = (pl.cdiv(H, th), pl.cdiv(B, tb))

    per_step = (tb * D * x_bytes            # x tile
                + 3 * D * th * w_bytes      # gate-split weight tile
                + tb * th * hx_bytes        # hx tile
                + 2 * tb * th * out_bytes)  # hy, cy tiles
    interm = 8 * tb * th * 4                # f32 epilogue temporaries headroom
    vmem_limit = int(min(max(2 * per_step + interm + (4 << 20), 16 << 20), cap))

    return pl.pallas_call(
        _min_lstm_kernel,
        out_shape=(
            jax.ShapeDtypeStruct((B, H), out_dtype),
            jax.ShapeDtypeStruct((B, H), out_dtype),
        ),
        grid=grid,
        in_specs=[
            pl.BlockSpec((tb, D), lambda j, i: (i, 0)),       # x: batch-tiled
            pl.BlockSpec((3, D, th), lambda j, i: (0, 0, j)),  # weight: hidden-tiled, batch-invariant
            pl.BlockSpec((tb, th), lambda j, i: (i, j)),       # hx
        ],
        out_specs=(
            pl.BlockSpec((tb, th), lambda j, i: (i, j)),       # hy
            pl.BlockSpec((tb, th), lambda j, i: (i, j)),       # cy
        ),
        compiler_params=pltpu.CompilerParams(
            dimension_semantics=("parallel", "arbitrary"),
            vmem_limit_bytes=vmem_limit,
        ),
    )(xc, wc, hx)


# --------------------------------------------------------------------------- #
# Pure-JAX references
# --------------------------------------------------------------------------- #
def min_lstm_cell_ref(x, weight, hx, compute_dtype=None):
    """Reference mirroring the PyTorch module.

    If compute_dtype is given, the matmul operands are cast to it (with f32
    accumulation), matching the kernel's arithmetic path.
    """
    if compute_dtype is not None:
        xg = x.astype(compute_dtype)
        wg = weight.astype(compute_dtype)
    else:
        xg, wg = x, weight
    gates = jnp.dot(xg, wg, preferred_element_type=jnp.float32)
    H = hx.shape[-1]
    ingate = jax.nn.sigmoid(gates[:, :H])
    forgetgate = jax.nn.sigmoid(gates[:, H:2 * H])
    cellgate = gates[:, 2 * H:]
    ingate = ingate / (ingate + forgetgate)
    forgetgate = 1.0 - ingate
    hy = hx.astype(jnp.float32) * forgetgate + ingate * cellgate
    return hy.astype(x.dtype), cellgate.astype(x.dtype)


# --------------------------------------------------------------------------- #
# Self-test
# --------------------------------------------------------------------------- #
if __name__ == "__main__":
    B = 8    # batch
    D = 16   # input_size
    H = 32   # num_hidden

    key = jax.random.PRNGKey(0)
    kx, kh, kw = jax.random.split(key, 3)

    x = jax.random.normal(kx, (B, D), dtype=jnp.float32)
    hx0 = jax.random.normal(kh, (B, H), dtype=jnp.float32)
    # PyTorch Linear default init: U(-1/sqrt(D), 1/sqrt(D)); x2h_bias=False.
    bound = 1.0 / jnp.sqrt(jnp.float32(D))
    weight = jax.random.uniform(kw, (D, 3 * H), dtype=jnp.float32,
                                minval=-bound, maxval=bound)

    # One-time init-time weight preparation (gate-split, bf16).
    w_prep = prepare_weight(weight)

    hy, cy = min_lstm_cell(x, w_prep, hx0)
    jax.block_until_ready((hy, cy))
    assert hy.shape == (B, H) and cy.shape == (B, H)

    # Tight check: reference using the same bf16-input / f32-accumulate path.
    hy_bf, cy_bf = min_lstm_cell_ref(x, weight, hx0, compute_dtype=jnp.bfloat16)
    assert jnp.allclose(hy, hy_bf, atol=2e-3, rtol=2e-3)
    assert jnp.allclose(cy, cy_bf, atol=2e-3, rtol=2e-3)

    # Loose semantic check against the pure-f32 PyTorch formula (covers the
    # expected bf16 matmul quantization error).
    hy_f32, cy_f32 = min_lstm_cell_ref(x, weight, hx0)
    assert jnp.allclose(hy, hy_f32, atol=5e-2, rtol=5e-2)
    assert jnp.allclose(cy, cy_f32, atol=5e-2, rtol=5e-2)

    print("KERNEL_OK")
</pallas_src>

<mosaic_0001>
module attributes {stable_mosaic.version = 11 : i64} {
  func.func @_min_lstm_kernel(%arg0: i32, %arg1: i32, %arg2: memref<8x16xbf16, #tpu.memory_space<vmem>>, %arg3: memref<3x16x32xbf16, #tpu.memory_space<vmem>>, %arg4: memref<8x32xf32, #tpu.memory_space<vmem>>, %arg5: memref<8x32xf32, #tpu.memory_space<vmem>>, %arg6: memref<8x32xf32, #tpu.memory_space<vmem>>) attributes {dimension_semantics = [#tpu.dimension_semantics<parallel>, #tpu.dimension_semantics<arbitrary>], iteration_bounds = array<i64: 1, 1>, scalar_prefetch = 0 : i64, scratch_operands = 0 : i64, tpu.core_type = #tpu.core_type<tc>, window_params = [{transform_indices = @transform_0, window_bounds = array<i64: 8, 16>}, {transform_indices = @transform_1, window_bounds = array<i64: 3, 16, 32>}, {transform_indices = @transform_2, window_bounds = array<i64: 8, 32>}, {transform_indices = @transform_3, window_bounds = array<i64: 8, 32>}, {transform_indices = @transform_4, window_bounds = array<i64: 8, 32>}]} {
    %c0 = arith.constant 0 : index
    %c0_0 = arith.constant 0 : index
    %0 = vector.load %arg2[%c0, %c0_0] : memref<8x16xbf16, #tpu.memory_space<vmem>>, vector<8x16xbf16>
    %c0_1 = arith.constant 0 : index
    %c0_2 = arith.constant 0 : index
    %c0_3 = arith.constant 0 : index
    %1 = vector.load %arg3[%c0_1, %c0_2, %c0_3] : memref<3x16x32xbf16, #tpu.memory_space<vmem>>, vector<1x16x32xbf16>
    %2 = vector.shape_cast %1 : vector<1x16x32xbf16> to vector<16x32xbf16>
    %cst = arith.constant dense<0.000000e+00> : vector<8x32xf32>
    %3 = tpu.matmul %0, %2, %cst {dimension_numbers = #tpu.dot_dimension_numbers<[1], [0], [0], [1], [0, 0, 1, 1], [], []>} : vector<8x16xbf16>, vector<16x32xbf16>, vector<8x32xf32> -> vector<8x32xf32>
    %c1 = arith.constant 1 : index
    %c0_4 = arith.constant 0 : index
    %c0_5 = arith.constant 0 : index
    %4 = vector.load %arg3[%c1, %c0_4, %c0_5] : memref<3x16x32xbf16, #tpu.memory_space<vmem>>, vector<1x16x32xbf16>
    %5 = vector.shape_cast %4 : vector<1x16x32xbf16> to vector<16x32xbf16>
    %cst_6 = arith.constant dense<0.000000e+00> : vector<8x32xf32>
    %6 = tpu.matmul %0, %5, %cst_6 {dimension_numbers = #tpu.dot_dimension_numbers<[1], [0], [0], [1], [0, 0, 1, 1], [], []>} : vector<8x16xbf16>, vector<16x32xbf16>, vector<8x32xf32> -> vector<8x32xf32>
    %c2 = arith.constant 2 : index
    %c0_7 = arith.constant 0 : index
    %c0_8 = arith.constant 0 : index
    %7 = vector.load %arg3[%c2, %c0_7, %c0_8] : memref<3x16x32xbf16, #tpu.memory_space<vmem>>, vector<1x16x32xbf16>
    %8 = vector.shape_cast %7 : vector<1x16x32xbf16> to vector<16x32xbf16>
    %cst_9 = arith.constant dense<0.000000e+00> : vector<8x32xf32>
    %9 = tpu.matmul %0, %8, %cst_9 {dimension_numbers = #tpu.dot_dimension_numbers<[1], [0], [0], [1], [0, 0, 1, 1], [], []>} : vector<8x16xbf16>, vector<16x32xbf16>, vector<8x32xf32> -> vector<8x32xf32>
    %10 = arith.negf %3 : vector<8x32xf32>
    %11 = math.exp %10 : vector<8x32xf32>
    %cst_10 = arith.constant 1.000000e+00 : f32
    %12 = vector.broadcast %cst_10 : f32 to vector<8x32xf32>
    %13 = arith.addf %12, %11 : vector<8x32xf32>
    %14 = arith.divf %12, %13 : vector<8x32xf32>
    %15 = arith.negf %6 : vector<8x32xf32>
    %16 = math.exp %15 : vector<8x32xf32>
    %cst_11 = arith.constant 1.000000e+00 : f32
    %17 = vector.broadcast %cst_11 : f32 to vector<8x32xf32>
    %18 = arith.addf %17, %16 : vector<8x32xf32>
    %19 = arith.divf %17, %18 : vector<8x32xf32>
    %20 = arith.addf %14, %19 : vector<8x32xf32>
    %21 = tpu.reciprocal %20 {approx = true} : vector<8x32xf32> -> vector<8x32xf32>
    %22 = arith.mulf %20, %21 : vector<8x32xf32>
    %cst_12 = arith.constant 2.000000e+00 : f32
    %23 = vector.broadcast %cst_12 : f32 to vector<8x32xf32>
    %24 = arith.subf %23, %22 : vector<8x32xf32>
    %25 = arith.mulf %21, %24 : vector<8x32xf32>
    %26 = arith.mulf %14, %25 : vector<8x32xf32>
    %c0_13 = arith.constant 0 : index
    %c0_14 = arith.constant 0 : index
    %27 = vector.load %arg4[%c0_13, %c0_14] : memref<8x32xf32, #tpu.memory_space<vmem>>, vector<8x32xf32>
    %28 = arith.subf %9, %27 : vector<8x32xf32>
    %29 = arith.mulf %26, %28 : vector<8x32xf32>
    %30 = arith.addf %27, %29 : vector<8x32xf32>
    %c0_15 = arith.constant 0 : index
    %c0_16 = arith.constant 0 : index
    %31 = vector.load %arg5[%c0_15, %c0_16] : memref<8x32xf32, #tpu.memory_space<vmem>>, vector<8x32xf32>
    tpu.vector_store %arg5[%c0_15, %c0_16], %30 {strides = array<i32>} : memref<8x32xf32, #tpu.memory_space<vmem>>, vector<8x32xf32>,
    %c0_17 = arith.constant 0 : index
    %c0_18 = arith.constant 0 : index
    %32 = vector.load %arg6[%c0_17, %c0_18] : memref<8x32xf32, #tpu.memory_space<vmem>>, vector<8x32xf32>
    tpu.vector_store %arg6[%c0_17, %c0_18], %9 {strides = array<i32>} : memref<8x32xf32, #tpu.memory_space<vmem>>, vector<8x32xf32>,
    return
  }
  func.func @transform_0(%arg0: i32, %arg1: i32) -> (i32, i32) {
    %c0_i32 = arith.constant 0 : i32
    %c0_i32_0 = arith.constant 0 : i32
    return %arg1, %c0_i32 : i32, i32
  }
  func.func @transform_1(%arg0: i32, %arg1: i32) -> (i32, i32, i32) {
    %c0_i32 = arith.constant 0 : i32
    %c0_i32_0 = arith.constant 0 : i32
    %c0_i32_1 = arith.constant 0 : i32
    return %c0_i32, %c0_i32_0, %arg0 : i32, i32, i32
  }
  func.func @transform_2(%arg0: i32, %arg1: i32) -> (i32, i32) {
    %c0_i32 = arith.constant 0 : i32
    return %arg1, %arg0 : i32, i32
  }
  func.func @transform_3(%arg0: i32, %arg1: i32) -> (i32, i32) {
    %c0_i32 = arith.constant 0 : i32
    return %arg1, %arg0 : i32, i32
  }
  func.func @transform_4(%arg0: i32, %arg1: i32) -> (i32, i32) {
    %c0_i32 = arith.constant 0 : i32
    return %arg1, %arg0 : i32, i32
  }
}

</mosaic_0001>

<llo_original>
// kernel: tpu_custom_call.1
$region0: #{tpu_custom_call.1}
  #allocation0 [shape = 'u32[]', space=smem, size = 0x4, offset = 0x4, fixed_abs, tag = 'smem constant byte address 0x4 - core index']
  #allocation1 [shape = 'u32[72,128]{1,0:T(1,128)}', space=vmem, size = 0x9000, scoped, tag = 'internal scratch']
  %s0 = inlined_call_operand.hbm [shape: bf16[8,16], index: 0, kind: input, shape index: {}]
  %s1 = inlined_call_operand.hbm [shape: bf16[3,16,32], index: 1, kind: input, shape index: {}]
  %s2 = inlined_call_operand.hbm [shape: f32[8,32], index: 2, kind: input, shape index: {}]
  %s3 = inlined_call_operand.hbm [shape: f32[8,32], index: 3, kind: output, shape index: {0}]
  %s4 = inlined_call_operand.hbm [shape: f32[8,32], index: 4, kind: output, shape index: {1}]
  %5 = xla_tuple %s3, %s4
  %s6 = sld [smem:[#allocation0]]
  $region42: #{tpu_custom_call.1} parent=0
    _
  %s8 = ssub.s32 1, %s6
  %s9 = scalar_select 0, %s8, %s6
  $region1: #{tpu_custom_call.1} parent=0
    #allocation2 [shape = 'u8[2048]{0}', space=vmem, size = 0x800, scoped, tag = 'input window, operand 0, single buffered']
    #allocation3 [shape = 's32[1]{0}', space=sflag, size = 0x4, scoped, tag = 'scoped memory for tpu_custom_call.1']
    #allocation4 [shape = 's32[1]{0}', space=sflag, size = 0x4, scoped, tag = 'scoped memory for tpu_custom_call.1']
    #allocation5 [shape = 'u8[12288]{0}', space=vmem, size = 0x3000, scoped, tag = 'input window, operand 1, single buffered']
    #allocation6 [shape = 's32[1]{0}', space=sflag, size = 0x4, scoped, tag = 'scoped memory for tpu_custom_call.1']
    #allocation7 [shape = 'u8[4096]{0}', space=vmem, size = 0x1000, scoped, tag = 'input window, operand 2, single buffered']
    #allocation8 [shape = 'u8[4096]{0}', space=vmem, size = 0x1000, scoped, tag = 'output window, operand 0, single buffered']
    #allocation9 [shape = 'u8[4096]{0}', space=vmem, size = 0x1000, scoped, tag = 'output window, operand 1, single buffered']
    #allocation10 [shape = 's32[1]{0}', space=sflag, size = 0x4, scoped, tag = 'scoped memory for tpu_custom_call.1']
    %10 = vsyncpa [#allocation3], 0
    %11 = vsyncpa [#allocation6], 0
    %12 = vsyncpa [#allocation4], 0
    %13 = vsyncpa [#allocation10], 0
    // Predicated region
    $region2: #{tpu_custom_call.1} parent=1 // pred_check
      _
    $region3: #{tpu_custom_call.1} parent=1 // pred_check_branch
      %15 = sbr.rel (0) target = $region5
    $region4: #{tpu_custom_call.1} parent=1 // pred_region
      %17 = vsyncadd [#allocation3], 0
      %s19 = sshll.u32 %s0, 4
      %s20 = int_to_ptr.hbm [resolvable:$true] %s19
      %s21 = sshll.u32 [#allocation2], 4
      %s22 = int_to_ptr.vmem [resolvable:$true] %s21
      %24 = dma.hbm_to_vmem [thread:$0]  %s20, 64, %s22, [#allocation3]
    $region5: #{tpu_custom_call.1} parent=1 // pred_fallthru
      _
    // Predicated region
    $region6: #{tpu_custom_call.1} parent=1 // pred_check
      _
    $region7: #{tpu_custom_call.1} parent=1 // pred_check_branch
      %26 = sbr.rel (0) target = $region9
    $region8: #{tpu_custom_call.1} parent=1 // pred_region
      %28 = vsyncadd [#allocation6], 0
      %s29 = sshll.u32 %s1, 4
      %s30 = int_to_ptr.hbm [resolvable:$true] %s29
      %s31 = sshll.u32 [#allocation5], 4
      %s32 = int_to_ptr.vmem [resolvable:$true] %s31
      %37 = dma.hbm_to_vmem [thread:$0]  %s30, 384, %s32, [#allocation6], 64, 64, 4
    $region9: #{tpu_custom_call.1} parent=1 // pred_fallthru
      _
    // Predicated region
    $region10: #{tpu_custom_call.1} parent=1 // pred_check
      _
    $region11: #{tpu_custom_call.1} parent=1 // pred_check_branch
      %39 = sbr.rel (0) target = $region13
    $region12: #{tpu_custom_call.1} parent=1 // pred_region
      %41 = vsyncadd [#allocation6], 0
      %s43 = sshll.u32 %s2, 4
      %s44 = int_to_ptr.hbm [resolvable:$true] %s43
      %s45 = sshll.u32 [#allocation7], 4
      %s46 = int_to_ptr.vmem [resolvable:$true] %s45
      %48 = dma.hbm_to_vmem [thread:$0]  %s44, 128, %s46, [#allocation6]
    $region13: #{tpu_custom_call.1} parent=1 // pred_fallthru
      _
    // Predicated region
    $region14: #{tpu_custom_call.1} parent=1 // pred_check
      _
    $region15: #{tpu_custom_call.1} parent=1 // pred_check_branch
      %50 = sbr.rel (0) target = $region17
    $region16: #{tpu_custom_call.1} parent=1 // pred_region
      %52 = dma.done [#allocation3], 64
    $region17: #{tpu_custom_call.1} parent=1 // pred_fallthru
      _
    // Predicated region
    $region18: #{tpu_custom_call.1} parent=1 // pred_check
      _
    $region19: #{tpu_custom_call.1} parent=1 // pred_check_branch
      %54 = sbr.rel (0) target = $region21
    $region20: #{tpu_custom_call.1} parent=1 // pred_region
      %56 = dma.done [#allocation6], 384
    $region21: #{tpu_custom_call.1} parent=1 // pred_fallthru
      _
    // Predicated region
    $region22: #{tpu_custom_call.1} parent=1 // pred_check
      _
    $region23: #{tpu_custom_call.1} parent=1 // pred_check_branch
      %58 = sbr.rel (0) target = $region25
    $region24: #{tpu_custom_call.1} parent=1 // pred_region
      %60 = dma.done [#allocation6], 128
    $region25: #{tpu_custom_call.1} parent=1 // pred_fallthru
      _
    %v62 = vld [vmem:[#allocation2] sm:$0xf]
    %v63 = vld [vmem:[#allocation5] sm:$0xf]
    %v64 = vld [vmem:[#allocation5 + $0x4] sm:$0xf]
    %v67 = vunpack.c.l.b16 %v63
    %v68 = vunpack.c.l.b16 %v64
    %v69 = vpack.c.b16 %v68, %v67
    %vm71 = vcmask 130048
    %v73 = vsel %vm71, %v62, 0
    %75 = vmatpush.bf16.msra.mxu0 0
    %76 = vmatpush.bf16.msra.mxu0 0
    %77 = vmatpush.bf16.msra.mxu0 0
    %78 = vmatpush.bf16.msra.mxu0 0
    %79 = vmatpush.bf16.msra.mxu0 0
    %80 = vmatpush.bf16.msra.mxu0 0
    %81 = vmatpush.bf16.msra.mxu0 0
    %82 = vmatpush.bf16.msra.mxu0 %v69
    %83 = vmatmul.bf16.gmra.mxu0 %v73
    %v84 = vpop.f32.mrf.mxu0
    %v85 = vadd.f32 0.0, %v84
    %v86 = vpop.f32.mrf.mxu0
    %87 = vdwg.mxu0
    %s88 = scalar_lea.vmem [#allocation5], 8
    %v89 = vld [vmem:[%s88] sm:$0xf]
    %v90 = vld [vmem:[%s88 + $0x4] sm:$0xf]
    %v93 = vunpack.c.l.b16 %v89
    %v94 = vunpack.c.l.b16 %v90
    %v95 = vpack.c.b16 %v94, %v93
    %97 = vmatpush.bf16.msra.mxu0 0
    %98 = vmatpush.bf16.msra.mxu0 0
    %99 = vmatpush.bf16.msra.mxu0 0
    %100 = vmatpush.bf16.msra.mxu0 0
    %101 = vmatpush.bf16.msra.mxu0 0
    %102 = vmatpush.bf16.msra.mxu0 0
    %103 = vmatpush.bf16.msra.mxu0 0
    %104 = vmatpush.bf16.msra.mxu0 %v95
    %105 = vmatmul.bf16.gmra.mxu0 %v73
    %v106 = vpop.f32.mrf.mxu0
    %v107 = vadd.f32 0.0, %v106
    %v108 = vpop.f32.mrf.mxu0
    %109 = vdwg.mxu0
    %s110 = scalar_lea.vmem [#allocation5], 16
    %v111 = vld [vmem:[%s110] sm:$0xf]
    %v112 = vld [vmem:[%s110 + $0x4] sm:$0xf]
    %v115 = vunpack.c.l.b16 %v111
    %v116 = vunpack.c.l.b16 %v112
    %v117 = vpack.c.b16 %v116, %v115
    %119 = vmatpush.bf16.msra.mxu0 0
    %120 = vmatpush.bf16.msra.mxu0 0
    %121 = vmatpush.bf16.msra.mxu0 0
    %122 = vmatpush.bf16.msra.mxu0 0
    %123 = vmatpush.bf16.msra.mxu0 0
    %124 = vmatpush.bf16.msra.mxu0 0
    %125 = vmatpush.bf16.msra.mxu0 0
    %126 = vmatpush.bf16.msra.mxu0 %v117
    %127 = vmatmul.bf16.gmra.mxu0 %v73
    %v128 = vpop.f32.mrf.mxu0
    %v129 = vadd.f32 0.0, %v128
    %v130 = vpop.f32.mrf.mxu0
    %131 = vdwg.mxu0
    %v132 = vxor.u32 %v85, 2147483648
    %v133 = vmul.f32 %v132, 1.442695
    %v134 = vpow.pop %v133
    %v135 = vadd.f32 %v134, 1.0
    %v136 = vrcp.pop %v135
    %v137 = vmul.f32 %v135, %v136
    %v138 = vsub.f32 1.0, %v137
    %v139 = vmul.f32 %v136, %v138
    %v140 = vadd.f32 %v136, %v139
    %vm141 = vweird.f32 %v135
    %vm142 = vweird.f32 %v136
    %vm143 = vmor %vm141, %vm142
    %v144 = vsel %vm143, %v136, %v140
    %v145 = vand.u32 2147483647, %v135
    %vm146 = vcmp.eq.f32.partialorder %v145, 8.507059e+37
    %v147 = vand.u32 %v135, 2147483648
    %v148 = vor.u32 1.1754944e-38, %v147
    %v149 = vsel %vm146, %v148, %v144
    %v150 = vmul.f32 1.0, %v149
    %v151 = vxor.u32 %v107, 2147483648
    %v152 = vmul.f32 %v151, 1.442695
    %v153 = vpow.pop %v152
    %v154 = vadd.f32 %v153, 1.0
    %v155 = vrcp.pop %v154
    %v156 = vmul.f32 %v154, %v155
    %v157 = vsub.f32 1.0, %v156
    %v158 = vmul.f32 %v155, %v157
    %v159 = vadd.f32 %v155, %v158
    %vm160 = vweird.f32 %v154
    %vm161 = vweird.f32 %v155
    %vm162 = vmor %vm160, %vm161
    %v163 = vsel %vm162, %v155, %v159
    %v164 = vand.u32 2147483647, %v154
    %vm165 = vcmp.eq.f32.partialorder %v164, 8.507059e+37
    %v166 = vand.u32 %v154, 2147483648
    %v167 = vor.u32 1.1754944e-38, %v166
    %v168 = vsel %vm165, %v167, %v163
    %v169 = vmul.f32 1.0, %v168
    %v170 = vadd.f32 %v150, %v169
    %v171 = vrcp.pop %v170
    %v172 = vmul.f32 %v170, %v171
    %v173 = vsub.f32 2.0, %v172
    %v174 = vmul.f32 %v171, %v173
    %v175 = vmul.f32 %v150, %v174
    %v176 = vld [vmem:[#allocation7] sm:$0xff]
    %v177 = vsub.f32 %v129, %v176
    %v178 = vmul.f32 %v175, %v177
    %v179 = vadd.f32 %v176, %v178
    %vm180 = vcmask 261120
    %181 = vst.msk [vmem:[#allocation8] sm:$0xff] %vm180, %v179
    %182 = vst.msk [vmem:[#allocation9] sm:$0xff] %vm180, %v129
    // Predicated region
    $region26: #{tpu_custom_call.1} parent=1 // pred_check
      _
    $region27: #{tpu_custom_call.1} parent=1 // pred_check_branch
      %184 = sbr.rel (0) target = $region29
    $region28: #{tpu_custom_call.1} parent=1 // pred_region
      %186 = vsyncadd [#allocation4], 0
      %s188 = sshll.u32 [#allocation8], 4
      %s189 = int_to_ptr.vmem [resolvable:$true] %s188
      %s190 = sshll.u32 %s3, 4
      %s191 = int_to_ptr.hbm [resolvable:$true] %s190
      %193 = dma.vmem_to_hbm [thread:$0]  %s189, 128, %s191, [#allocation4]
    $region29: #{tpu_custom_call.1} parent=1 // pred_fallthru
      _
    // Predicated region
    $region30: #{tpu_custom_call.1} parent=1 // pred_check
      _
    $region31: #{tpu_custom_call.1} parent=1 // pred_check_branch
      %195 = sbr.rel (0) target = $region33
    $region32: #{tpu_custom_call.1} parent=1 // pred_region
      %197 = vsyncadd [#allocation10], 0
      %s199 = sshll.u32 [#allocation9], 4
      %s200 = int_to_ptr.vmem [resolvable:$true] %s199
      %s201 = sshll.u32 %s4, 4
      %s202 = int_to_ptr.hbm [resolvable:$true] %s201
      %204 = dma.vmem_to_hbm [thread:$0]  %s200, 128, %s202, [#allocation10]
    $region33: #{tpu_custom_call.1} parent=1 // pred_fallthru
      _
    // Predicated region
    $region34: #{tpu_custom_call.1} parent=1 // pred_check
      _
    $region35: #{tpu_custom_call.1} parent=1 // pred_check_branch
      %206 = sbr.rel (0) target = $region37
    $region36: #{tpu_custom_call.1} parent=1 // pred_region
      %208 = dma.done [#allocation4], 128
    $region37: #{tpu_custom_call.1} parent=1 // pred_fallthru
      _
    // Predicated region
    $region38: #{tpu_custom_call.1} parent=1 // pred_check
      _
    $region39: #{tpu_custom_call.1} parent=1 // pred_check_branch
      %210 = sbr.rel (0) target = $region41
    $region40: #{tpu_custom_call.1} parent=1 // pred_region
      %212 = dma.done [#allocation10], 128
    $region41: #{tpu_custom_call.1} parent=1 // pred_fallthru
      _
    %213 = vsyncpa [#allocation3], 1
    %214 = vsyncpa [#allocation6], 1
    %215 = vsyncpa [#allocation4], 1
    %216 = vsyncpa [#allocation10], 1

</llo_original>
